<compile_context>
chip_gen: v7x
topology: tpu7x:2x2x1
jax: 0.10.0
libtpu: 0.0.40
codegen_flags: <defaults>
</compile_context>

<pallas_src>
import jax
import jax.numpy as jnp
from jax.experimental import pallas as pl
from jax.experimental.pallas import tpu as pltpu


LANE = 128


def _round_up(n, m):
    return ((n + m - 1) // m) * m


# ----------------------------------------------------------------------------
# One-time probe: can this JAX build single-buffer a VMEM-resident operand?
# ----------------------------------------------------------------------------
_SINGLE_BUFFER_MODE = None
_SINGLE_BUFFER_PROBED = False


def _weight_pipeline_mode():
    """pl.Buffered(1) if accepted by this build, else None (default buffering)."""
    global _SINGLE_BUFFER_MODE, _SINGLE_BUFFER_PROBED
    if _SINGLE_BUFFER_PROBED:
        return _SINGLE_BUFFER_MODE
    _SINGLE_BUFFER_PROBED = True
    try:
        mode = pl.Buffered(1)

        def _k(x_ref, o_ref):
            o_ref[...] = x_ref[...] + 1.0

        fn = pl.pallas_call(
            _k,
            out_shape=jax.ShapeDtypeStruct((8, 128), jnp.float32),
            grid=(2,),
            in_specs=[pl.BlockSpec((8, 128), lambda i: (0, 0),
                                   pipeline_mode=mode)],
            out_specs=pl.BlockSpec((8, 128), lambda i: (0, 0)),
        )
        jax.jit(fn).lower(
            jax.ShapeDtypeStruct((8, 128), jnp.float32)).compile()
        _SINGLE_BUFFER_MODE = mode
    except Exception:
        _SINGLE_BUFFER_MODE = None
    return _SINGLE_BUFFER_MODE


def _const_spec(shape, pipe_mode):
    """BlockSpec pinned to block (0, 0) for every grid step (VMEM-resident)."""
    if pipe_mode is None:
        return pl.BlockSpec(shape, lambda i: (0, 0))
    return pl.BlockSpec(shape, lambda i: (0, 0), pipeline_mode=pipe_mode)


# ----------------------------------------------------------------------------
# Fused multi-layer kernel:  h = x; for each layer: h = [relu](h @ W_t + b)
# bf16 operands into every MXU dot, f32 accumulate, elementwise in f32.
# ----------------------------------------------------------------------------
def _make_fused_kernel(relu_flags):
    n_layers = len(relu_flags)

    def kernel(*refs):
        x_ref = refs[0]
        o_ref = refs[-1]
        params = refs[1:-1]                          # (w_t bf16, b f32) pairs
        h = x_ref[...]                               # (bm, in_pad) bf16
        for li, relu in enumerate(relu_flags):
            w = params[2 * li][...]                  # (in_pad, out_pad) bf16
            b = params[2 * li + 1][...]              # (1, out_pad) f32
            acc = jnp.dot(h, w, preferred_element_type=jnp.float32) + b
            if relu:
                acc = jnp.maximum(acc, 0.0)          # f32 elementwise (v5e-safe)
            h = acc.astype(jnp.bfloat16) if li + 1 < n_layers else acc
        o_ref[...] = h.astype(o_ref.dtype)           # lane-dense (bm, out_pad)

    return kernel


def _choose_bm(batch):
    if batch >= 512:
        # >= 2 grid steps so the "parallel" axis can shard rows across the two
        # v7x TensorCores; cap at 512 rows (>=85% of roofline in tile sweeps).
        return min(_round_up(pl.cdiv(batch, 2), 8), 512)
    return _round_up(batch, 8)


def _fused_forward(x, layers, in_dim, in_pad, final_out_dim, relu_flags,
                   pipe_mode):
    """pad(x) -> single fused pallas_call over all layers -> slice back."""
    batch = x.shape[0]
    bm = _choose_bm(batch)
    b_pad = _round_up(batch, bm)
    grid = (b_pad // bm,)

    # Lane-dense, MXU-ready input: zero-pad rows/features, cast to bf16.
    x_p = jnp.zeros((b_pad, in_pad), jnp.bfloat16)
    x_p = x_p.at[:batch, :in_dim].set(x.astype(jnp.bfloat16))

    out_pad = layers[-1][0].shape[1]

    operands = [x_p]
    in_specs = [pl.BlockSpec((bm, in_pad), lambda i: (i, 0))]
    for wt, bt in layers:
        operands += [wt, bt]
        in_specs += [_const_spec(wt.shape, pipe_mode),
                     _const_spec(bt.shape, pipe_mode)]

    y_pad = pl.pallas_call(
        _make_fused_kernel(relu_flags),
        out_shape=jax.ShapeDtypeStruct((b_pad, out_pad), jnp.float32),
        grid_spec=pltpu.PrefetchScalarGridSpec(
            num_scalar_prefetch=0,
            grid=grid,
            in_specs=in_specs,
            out_specs=pl.BlockSpec((bm, out_pad), lambda i: (i, 0)),
        ),
        compiler_params=pltpu.CompilerParams(
            dimension_semantics=("parallel",)),
    )(*operands)

    # Padded rows / columns are exactly zero by construction; slice them off.
    # Under jit this slice fuses with the kernel's consumer (no extra dispatch).
    return y_pad[:batch, :final_out_dim]


# ----------------------------------------------------------------------------
# Model (glue, mirrors PipelineStage / AsyncPipelineParallelModel semantics)
# ----------------------------------------------------------------------------
class AsyncPipelineParallelModelJAX:
    """Single-process functional equivalent of AsyncPipelineParallelModel.

    stage_layer_specs: list (per stage) of lists of
        {"weight": (out, in), "bias": (out,), "relu": bool}
    All stages are applied in order (what the async workers across ranks would
    compute); the result is what the last stage's output_queue would yield.
    """

    def __init__(self, stage_layer_specs, chunks=1, micro_batch_size=2):
        # Kept for API parity; Linear/ReLU are row-wise independent so one
        # fused pass over the full batch == sequential micro-batching.
        self.chunks = chunks
        self.micro_batch_size = micro_batch_size

        raw_layers = [dict(l) for stage in stage_layer_specs for l in stage]
        self.raw_layers = raw_layers
        self.in_dim = int(raw_layers[0]["weight"].shape[1])
        self.in_pad = _round_up(self.in_dim, LANE)
        self.final_out_dim = int(raw_layers[-1]["weight"].shape[0])
        self.relu_flags = tuple(bool(l["relu"]) for l in raw_layers)

        # Pre-transpose to (in, out), zero-pad to 128 lanes, downcast weights
        # to bf16 (MXU-native) ONCE at build time.  Biases stay f32 (added in
        # the f32 accumulator).
        layers = []
        prev_out_pad = self.in_pad
        for l in raw_layers:
            w = jnp.asarray(l["weight"], jnp.float32)    # (out, in)
            b = jnp.asarray(l["bias"], jnp.float32)      # (out,)
            out_d, in_d = w.shape
            in_pad = prev_out_pad
            out_pad = _round_up(out_d, LANE)
            wt = jnp.zeros((in_pad, out_pad), jnp.float32)
            wt = wt.at[:in_d, :out_d].set(w.T).astype(jnp.bfloat16)
            bt = jnp.zeros((1, out_pad), jnp.float32).at[0, :out_d].set(b)
            layers.append((wt, bt))
            prev_out_pad = out_pad
        self.layers = tuple(layers)

        pipe_mode = _weight_pipeline_mode()
        layers_t = self.layers
        in_dim, in_pad = self.in_dim, self.in_pad
        final_out_dim, relu_flags = self.final_out_dim, self.relu_flags

        # Whole forward (pad -> fused pallas_call -> slice) in ONE jit dispatch.
        self._forward_jit = jax.jit(
            lambda x: _fused_forward(x, layers_t, in_dim, in_pad,
                                     final_out_dim, relu_flags, pipe_mode))

    def forward(self, x):
        return self._forward_jit(x)

    __call__ = forward


# ----------------------------------------------------------------------------
# Deterministic parameter construction + references + demo
# ----------------------------------------------------------------------------
def _make_linear_params(key, in_dim, out_dim):
    kw, kb = jax.random.split(key)
    bound = 1.0 / (in_dim ** 0.5)        # nn.Linear default init range
    w = jax.random.uniform(kw, (out_dim, in_dim), jnp.float32, -bound, bound)
    b = jax.random.uniform(kb, (out_dim,), jnp.float32, -bound, bound)
    return w, b


def build_model(key, hidden_in=32, hidden_mid=64, hidden_out=32):
    # NOTE: hidden sizes that are multiples of 128 (256 on v6e/v7x) would make
    # the lane padding free work; kept small here to match the reference module.
    keys = jax.random.split(key, 4)
    # Stage 0: Linear(in->mid) + ReLU, Linear(mid->mid) + ReLU
    w0, b0 = _make_linear_params(keys[0], hidden_in, hidden_mid)
    w1, b1 = _make_linear_params(keys[1], hidden_mid, hidden_mid)
    stage0 = [{"weight": w0, "bias": b0, "relu": True},
              {"weight": w1, "bias": b1, "relu": True}]
    # Stage 1: Linear(mid->mid) + ReLU, Linear(mid->out) (no activation on head)
    w2, b2 = _make_linear_params(keys[2], hidden_mid, hidden_mid)
    w3, b3 = _make_linear_params(keys[3], hidden_mid, hidden_out)
    stage1 = [{"weight": w2, "bias": b2, "relu": True},
              {"weight": w3, "bias": b3, "relu": False}]
    return AsyncPipelineParallelModelJAX([stage0, stage1],
                                         chunks=2, micro_batch_size=4)


def _reference_forward_f32(raw_layers, x):
    """Pure-jnp full-f32 reference using the RAW (out, in) weights."""
    h = x
    for l in raw_layers:
        w = jnp.asarray(l["weight"], jnp.float32)
        b = jnp.asarray(l["bias"], jnp.float32)
        h = h @ w.T + b
        if l["relu"]:
            h = jnp.maximum(h, 0.0)
    return h


def _reference_forward_bf16(raw_layers, x):
    """Raw-weight reference in matching arithmetic: bf16 operands into every
    dot, f32 accumulate, bias/ReLU in f32, re-cast to bf16 for the next dot."""
    h = x.astype(jnp.bfloat16)
    n = len(raw_layers)
    for i, l in enumerate(raw_layers):
        w = jnp.asarray(l["weight"], jnp.float32).T.astype(jnp.bfloat16)
        b = jnp.asarray(l["bias"], jnp.float32)
        acc = jnp.dot(h, w, preferred_element_type=jnp.float32) + b
        if l["relu"]:
            acc = jnp.maximum(acc, 0.0)
        h = acc.astype(jnp.bfloat16) if i + 1 < n else acc
    return h


if __name__ == "__main__":
    key = jax.random.PRNGKey(0)
    k_model, k_x = jax.random.split(key)

    batch, hidden = 8, 32
    x = jax.random.normal(k_x, (batch, hidden), jnp.float32)

    model = build_model(k_model, hidden_in=hidden, hidden_mid=64,
                        hidden_out=hidden)
    out = model.forward(x)
    jax.block_until_ready(out)

    assert out.shape == (batch, hidden), out.shape
    assert out.dtype == jnp.float32

    # Tight check vs. raw-weight reference in matching bf16/f32-accum math
    # (catches any padding / transpose construction bug).
    ref_bf16 = _reference_forward_bf16(model.raw_layers, x)
    assert jnp.allclose(out, ref_bf16, atol=1e-4, rtol=1e-4), \
        float(jnp.max(jnp.abs(out - ref_bf16)))

    # Loose sanity check vs. full-f32 math (difference = bf16 operand rounding).
    ref_f32 = _reference_forward_f32(model.raw_layers, x)
    assert jnp.allclose(out, ref_f32, atol=5e-2, rtol=5e-2), \
        float(jnp.max(jnp.abs(out - ref_f32)))

    print("KERNEL_OK")
</pallas_src>

<mosaic_0001>
module attributes {stable_mosaic.version = 11 : i64} {
  func.func @kernel(%arg0: i32, %arg1: memref<8x128xbf16, #tpu.memory_space<vmem>>, %arg2: memref<128x128xbf16, #tpu.memory_space<vmem>>, %arg3: memref<1x128xf32, #tpu.memory_space<vmem>>, %arg4: memref<128x128xbf16, #tpu.memory_space<vmem>>, %arg5: memref<1x128xf32, #tpu.memory_space<vmem>>, %arg6: memref<128x128xbf16, #tpu.memory_space<vmem>>, %arg7: memref<1x128xf32, #tpu.memory_space<vmem>>, %arg8: memref<128x128xbf16, #tpu.memory_space<vmem>>, %arg9: memref<1x128xf32, #tpu.memory_space<vmem>>, %arg10: memref<8x128xf32, #tpu.memory_space<vmem>>) attributes {dimension_semantics = [#tpu.dimension_semantics<parallel>], iteration_bounds = array<i64: 1>, scalar_prefetch = 0 : i64, scratch_operands = 0 : i64, tpu.core_type = #tpu.core_type<tc>, window_params = [{transform_indices = @transform_0, window_bounds = array<i64: 8, 128>}, {pipeline_mode = #tpu.pipeline_mode<synchronous>, transform_indices = @transform_1, window_bounds = array<i64: 128, 128>}, {pipeline_mode = #tpu.pipeline_mode<synchronous>, transform_indices = @transform_2, window_bounds = array<i64: 1, 128>}, {pipeline_mode = #tpu.pipeline_mode<synchronous>, transform_indices = @transform_3, window_bounds = array<i64: 128, 128>}, {pipeline_mode = #tpu.pipeline_mode<synchronous>, transform_indices = @transform_4, window_bounds = array<i64: 1, 128>}, {pipeline_mode = #tpu.pipeline_mode<synchronous>, transform_indices = @transform_5, window_bounds = array<i64: 128, 128>}, {pipeline_mode = #tpu.pipeline_mode<synchronous>, transform_indices = @transform_6, window_bounds = array<i64: 1, 128>}, {pipeline_mode = #tpu.pipeline_mode<synchronous>, transform_indices = @transform_7, window_bounds = array<i64: 128, 128>}, {pipeline_mode = #tpu.pipeline_mode<synchronous>, transform_indices = @transform_8, window_bounds = array<i64: 1, 128>}, {transform_indices = @transform_9, window_bounds = array<i64: 8, 128>}]} {
    %c0 = arith.constant 0 : index
    %c0_0 = arith.constant 0 : index
    %0 = vector.load %arg1[%c0, %c0_0] : memref<8x128xbf16, #tpu.memory_space<vmem>>, vector<8x128xbf16>
    %c0_1 = arith.constant 0 : index
    %c0_2 = arith.constant 0 : index
    %1 = vector.load %arg2[%c0_1, %c0_2] : memref<128x128xbf16, #tpu.memory_space<vmem>>, vector<128x128xbf16>
    %c0_3 = arith.constant 0 : index
    %c0_4 = arith.constant 0 : index
    %2 = vector.load %arg3[%c0_3, %c0_4] : memref<1x128xf32, #tpu.memory_space<vmem>>, vector<1x128xf32>
    %cst = arith.constant dense<0.000000e+00> : vector<8x128xf32>
    %3 = tpu.matmul %0, %1, %cst {dimension_numbers = #tpu.dot_dimension_numbers<[1], [0], [0], [1], [0, 0, 1, 1], [], []>} : vector<8x128xbf16>, vector<128x128xbf16>, vector<8x128xf32> -> vector<8x128xf32>
    %4 = vector.broadcast %2 : vector<1x128xf32> to vector<8x128xf32>
    %5 = arith.addf %3, %4 : vector<8x128xf32>
    %cst_5 = arith.constant 0.000000e+00 : f32
    %6 = vector.broadcast %cst_5 : f32 to vector<8x128xf32>
    %7 = arith.maximumf %5, %6 : vector<8x128xf32>
    %8 = arith.truncf %7 : vector<8x128xf32> to vector<8x128xbf16>
    %c0_6 = arith.constant 0 : index
    %c0_7 = arith.constant 0 : index
    %9 = vector.load %arg4[%c0_6, %c0_7] : memref<128x128xbf16, #tpu.memory_space<vmem>>, vector<128x128xbf16>
    %c0_8 = arith.constant 0 : index
    %c0_9 = arith.constant 0 : index
    %10 = vector.load %arg5[%c0_8, %c0_9] : memref<1x128xf32, #tpu.memory_space<vmem>>, vector<1x128xf32>
    %cst_10 = arith.constant dense<0.000000e+00> : vector<8x128xf32>
    %11 = tpu.matmul %8, %9, %cst_10 {dimension_numbers = #tpu.dot_dimension_numbers<[1], [0], [0], [1], [0, 0, 1, 1], [], []>} : vector<8x128xbf16>, vector<128x128xbf16>, vector<8x128xf32> -> vector<8x128xf32>
    %12 = vector.broadcast %10 : vector<1x128xf32> to vector<8x128xf32>
    %13 = arith.addf %11, %12 : vector<8x128xf32>
    %cst_11 = arith.constant 0.000000e+00 : f32
    %14 = vector.broadcast %cst_11 : f32 to vector<8x128xf32>
    %15 = arith.maximumf %13, %14 : vector<8x128xf32>
    %16 = arith.truncf %15 : vector<8x128xf32> to vector<8x128xbf16>
    %c0_12 = arith.constant 0 : index
    %c0_13 = arith.constant 0 : index
    %17 = vector.load %arg6[%c0_12, %c0_13] : memref<128x128xbf16, #tpu.memory_space<vmem>>, vector<128x128xbf16>
    %c0_14 = arith.constant 0 : index
    %c0_15 = arith.constant 0 : index
    %18 = vector.load %arg7[%c0_14, %c0_15] : memref<1x128xf32, #tpu.memory_space<vmem>>, vector<1x128xf32>
    %cst_16 = arith.constant dense<0.000000e+00> : vector<8x128xf32>
    %19 = tpu.matmul %16, %17, %cst_16 {dimension_numbers = #tpu.dot_dimension_numbers<[1], [0], [0], [1], [0, 0, 1, 1], [], []>} : vector<8x128xbf16>, vector<128x128xbf16>, vector<8x128xf32> -> vector<8x128xf32>
    %20 = vector.broadcast %18 : vector<1x128xf32> to vector<8x128xf32>
    %21 = arith.addf %19, %20 : vector<8x128xf32>
    %cst_17 = arith.constant 0.000000e+00 : f32
    %22 = vector.broadcast %cst_17 : f32 to vector<8x128xf32>
    %23 = arith.maximumf %21, %22 : vector<8x128xf32>
    %24 = arith.truncf %23 : vector<8x128xf32> to vector<8x128xbf16>
    %c0_18 = arith.constant 0 : index
    %c0_19 = arith.constant 0 : index
    %25 = vector.load %arg8[%c0_18, %c0_19] : memref<128x128xbf16, #tpu.memory_space<vmem>>, vector<128x128xbf16>
    %c0_20 = arith.constant 0 : index
    %c0_21 = arith.constant 0 : index
    %26 = vector.load %arg9[%c0_20, %c0_21] : memref<1x128xf32, #tpu.memory_space<vmem>>, vector<1x128xf32>
    %cst_22 = arith.constant dense<0.000000e+00> : vector<8x128xf32>
    %27 = tpu.matmul %24, %25, %cst_22 {dimension_numbers = #tpu.dot_dimension_numbers<[1], [0], [0], [1], [0, 0, 1, 1], [], []>} : vector<8x128xbf16>, vector<128x128xbf16>, vector<8x128xf32> -> vector<8x128xf32>
    %28 = vector.broadcast %26 : vector<1x128xf32> to vector<8x128xf32>
    %29 = arith.addf %27, %28 : vector<8x128xf32>
    %c0_23 = arith.constant 0 : index
    %c0_24 = arith.constant 0 : index
    %30 = vector.load %arg10[%c0_23, %c0_24] : memref<8x128xf32, #tpu.memory_space<vmem>>, vector<8x128xf32>
    tpu.vector_store %arg10[%c0_23, %c0_24], %29 {strides = array<i32>} : memref<8x128xf32, #tpu.memory_space<vmem>>, vector<8x128xf32>,
    return
  }
  func.func @transform_0(%arg0: i32) -> (i32, i32) {
    %c0_i32 = arith.constant 0 : i32
    %c0_i32_0 = arith.constant 0 : i32
    return %arg0, %c0_i32 : i32, i32
  }
  func.func @transform_1(%arg0: i32) -> (i32, i32) {
    %c0_i32 = arith.constant 0 : i32
    %c0_i32_0 = arith.constant 0 : i32
    %c0_i32_1 = arith.constant 0 : i32
    return %c0_i32, %c0_i32_0 : i32, i32
  }
  func.func @transform_2(%arg0: i32) -> (i32, i32) {
    %c0_i32 = arith.constant 0 : i32
    %c0_i32_0 = arith.constant 0 : i32
    %c0_i32_1 = arith.constant 0 : i32
    return %c0_i32, %c0_i32_0 : i32, i32
  }
  func.func @transform_3(%arg0: i32) -> (i32, i32) {
    %c0_i32 = arith.constant 0 : i32
    %c0_i32_0 = arith.constant 0 : i32
    %c0_i32_1 = arith.constant 0 : i32
    return %c0_i32, %c0_i32_0 : i32, i32
  }
  func.func @transform_4(%arg0: i32) -> (i32, i32) {
    %c0_i32 = arith.constant 0 : i32
    %c0_i32_0 = arith.constant 0 : i32
    %c0_i32_1 = arith.constant 0 : i32
    return %c0_i32, %c0_i32_0 : i32, i32
  }
  func.func @transform_5(%arg0: i32) -> (i32, i32) {
    %c0_i32 = arith.constant 0 : i32
    %c0_i32_0 = arith.constant 0 : i32
    %c0_i32_1 = arith.constant 0 : i32
    return %c0_i32, %c0_i32_0 : i32, i32
  }
  func.func @transform_6(%arg0: i32) -> (i32, i32) {
    %c0_i32 = arith.constant 0 : i32
    %c0_i32_0 = arith.constant 0 : i32
    %c0_i32_1 = arith.constant 0 : i32
    return %c0_i32, %c0_i32_0 : i32, i32
  }
  func.func @transform_7(%arg0: i32) -> (i32, i32) {
    %c0_i32 = arith.constant 0 : i32
    %c0_i32_0 = arith.constant 0 : i32
    %c0_i32_1 = arith.constant 0 : i32
    return %c0_i32, %c0_i32_0 : i32, i32
  }
  func.func @transform_8(%arg0: i32) -> (i32, i32) {
    %c0_i32 = arith.constant 0 : i32
    %c0_i32_0 = arith.constant 0 : i32
    %c0_i32_1 = arith.constant 0 : i32
    return %c0_i32, %c0_i32_0 : i32, i32
  }
  func.func @transform_9(%arg0: i32) -> (i32, i32) {
    %c0_i32 = arith.constant 0 : i32
    %c0_i32_0 = arith.constant 0 : i32
    return %arg0, %c0_i32 : i32, i32
  }
}

</mosaic_0001>

<llo_original>
// kernel: _lambda_.1
$region0: #{_lambda_.1}
  #allocation0 [shape = 'u32[]', space=smem, size = 0x4, offset = 0x4, fixed_abs, tag = 'smem constant byte address 0x4 - core index']
  #allocation1 [shape = 'u32[144,128]{1,0:T(1,128)}', space=vmem, size = 0x12000, scoped, tag = 'internal scratch']
  %s0 = inlined_call_operand.vmem [shape: bf16[8,128], index: 0, kind: input, shape index: {}]
  %s1 = inlined_call_operand.hbm [shape: bf16[128,128], index: 1, kind: input, shape index: {}]
  %s2 = inlined_call_operand.vmem [shape: f32[1,128], index: 2, kind: input, shape index: {}]
  %s3 = inlined_call_operand.hbm [shape: bf16[128,128], index: 3, kind: input, shape index: {}]
  %s4 = inlined_call_operand.vmem [shape: f32[1,128], index: 4, kind: input, shape index: {}]
  %s5 = inlined_call_operand.hbm [shape: bf16[128,128], index: 5, kind: input, shape index: {}]
  %s6 = inlined_call_operand.vmem [shape: f32[1,128], index: 6, kind: input, shape index: {}]
  %s7 = inlined_call_operand.vmem [shape: bf16[128,128], index: 7, kind: input, shape index: {}]
  %s8 = inlined_call_operand.vmem [shape: f32[1,128], index: 8, kind: input, shape index: {}]
  %s9 = inlined_call_operand.hbm [shape: f32[8,128], index: 9, kind: output, shape index: {}]
  %s10 = sld [smem:[#allocation0]]
  $region58: #{_lambda_.1} parent=0
    _
  %s12 = ssub.s32 1, %s10
  %s13 = scalar_select 0, %s12, %s10
  $region1: #{_lambda_.1} parent=0
    #allocation2 [shape = 'u8[32768]{0}', space=vmem, size = 0x8000, scoped, tag = 'input window, operand 1, single buffered']
    #allocation3 [shape = 's32[1]{0}', space=sflag, size = 0x4, scoped, tag = 'scoped memory for _lambda_.1']
    #allocation4 [shape = 's32[1]{0}', space=sflag, size = 0x4, scoped, tag = 'scoped memory for _lambda_.1']
    #allocation5 [shape = 'u8[32768]{0}', space=vmem, size = 0x8000, scoped, tag = 'input window, operand 3, single buffered']
    #allocation6 [shape = 's32[1]{0}', space=sflag, size = 0x4, scoped, tag = 'scoped memory for _lambda_.1']
    #allocation7 [shape = 'u8[32768]{0}', space=vmem, size = 0x8000, scoped, tag = 'input window, operand 5, single buffered']
    #allocation8 [shape = 'u8[4096]{0}', space=vmem, size = 0x1000, scoped, tag = 'output window, operand 0, single buffered']
    %14 = vsyncpa [#allocation3], 0
    %15 = vsyncpa [#allocation6], 0
    %16 = vsyncpa [#allocation4], 0
    // Predicated region
    $region2: #{_lambda_.1} parent=1 // pred_check
      _
    $region3: #{_lambda_.1} parent=1 // pred_check_branch
      %18 = sbr.rel (0) target = $region5
    $region4: #{_lambda_.1} parent=1 // pred_region
      _
    $region5: #{_lambda_.1} parent=1 // pred_fallthru
      _
    // Predicated region
    $region6: #{_lambda_.1} parent=1 // pred_check
      _
    $region7: #{_lambda_.1} parent=1 // pred_check_branch
      %20 = sbr.rel (0) target = $region9
    $region8: #{_lambda_.1} parent=1 // pred_region
      %s22 = ssub.s32 1024, 1024
      %23 = vsyncadd [#allocation3], %s22
      %s24 = sshll.u32 [#allocation2], 4
      %s25 = int_to_ptr.vmem [resolvable:$true] %s24
      %30 = dma.hbm_to_vmem [thread:$0]  %s1, 1024, %s25, [#allocation3], 64, 64, 4
    $region9: #{_lambda_.1} parent=1 // pred_fallthru
      _
    // Predicated region
    $region10: #{_lambda_.1} parent=1 // pred_check
      _
    $region11: #{_lambda_.1} parent=1 // pred_check_branch
      %32 = sbr.rel (0) target = $region13
    $region12: #{_lambda_.1} parent=1 // pred_region
      _
    $region13: #{_lambda_.1} parent=1 // pred_fallthru
      _
    // Predicated region
    $region14: #{_lambda_.1} parent=1 // pred_check
      _
    $region15: #{_lambda_.1} parent=1 // pred_check_branch
      %34 = sbr.rel (0) target = $region17
    $region16: #{_lambda_.1} parent=1 // pred_region
      %s36 = ssub.s32 1024, 1024
      %37 = vsyncadd [#allocation6], %s36
      %s38 = sshll.u32 [#allocation5], 4
      %s39 = int_to_ptr.vmem [resolvable:$true] %s38
      %44 = dma.hbm_to_vmem [thread:$0]  %s3, 1024, %s39, [#allocation6], 64, 64, 4
    $region17: #{_lambda_.1} parent=1 // pred_fallthru
      _
    // Predicated region
    $region18: #{_lambda_.1} parent=1 // pred_check
      _
    $region19: #{_lambda_.1} parent=1 // pred_check_branch
      %46 = sbr.rel (0) target = $region21
    $region20: #{_lambda_.1} parent=1 // pred_region
      _
    $region21: #{_lambda_.1} parent=1 // pred_fallthru
      _
    // Predicated region
    $region22: #{_lambda_.1} parent=1 // pred_check
      _
    $region23: #{_lambda_.1} parent=1 // pred_check_branch
      %48 = sbr.rel (0) target = $region25
    $region24: #{_lambda_.1} parent=1 // pred_region
      %s50 = ssub.s32 1024, 1024
      %51 = vsyncadd [#allocation6], %s50
      %s52 = sshll.u32 [#allocation7], 4
      %s53 = int_to_ptr.vmem [resolvable:$true] %s52
      %58 = dma.hbm_to_vmem [thread:$0]  %s5, 1024, %s53, [#allocation6], 64, 64, 4
    $region25: #{_lambda_.1} parent=1 // pred_fallthru
      _
    // Predicated region
    $region26: #{_lambda_.1} parent=1 // pred_check
      _
    $region27: #{_lambda_.1} parent=1 // pred_check_branch
      %60 = sbr.rel (0) target = $region29
    $region28: #{_lambda_.1} parent=1 // pred_region
      _
    $region29: #{_lambda_.1} parent=1 // pred_fallthru
      _
    // Predicated region
    $region30: #{_lambda_.1} parent=1 // pred_check
      _
    $region31: #{_lambda_.1} parent=1 // pred_check_branch
      %62 = sbr.rel (0) target = $region33
    $region32: #{_lambda_.1} parent=1 // pred_region
      _
    $region33: #{_lambda_.1} parent=1 // pred_fallthru
      _
    // Predicated region
    $region34: #{_lambda_.1} parent=1 // pred_check
      _
    $region35: #{_lambda_.1} parent=1 // pred_check_branch
      %64 = sbr.rel (0) target = $region37
    $region36: #{_lambda_.1} parent=1 // pred_region
      _
    $region37: #{_lambda_.1} parent=1 // pred_fallthru
      _
    // Predicated region
    $region38: #{_lambda_.1} parent=1 // pred_check
      _
    $region39: #{_lambda_.1} parent=1 // pred_check_branch
      %66 = sbr.rel (0) target = $region41
    $region40: #{_lambda_.1} parent=1 // pred_region
      %67 = dma.done [#allocation3], 1024
    $region41: #{_lambda_.1} parent=1 // pred_fallthru
      _
    // Predicated region
    $region42: #{_lambda_.1} parent=1 // pred_check
      _
    $region43: #{_lambda_.1} parent=1 // pred_check_branch
      %69 = sbr.rel (0) target = $region45
    $region44: #{_lambda_.1} parent=1 // pred_region
      %70 = dma.done [#allocation6], 1024
    $region45: #{_lambda_.1} parent=1 // pred_fallthru
      _
    // Predicated region
    $region46: #{_lambda_.1} parent=1 // pred_check
      _
    $region47: #{_lambda_.1} parent=1 // pred_check_branch
      %72 = sbr.rel (0) target = $region49
    $region48: #{_lambda_.1} parent=1 // pred_region
      %73 = dma.done [#allocation6], 1024
    $region49: #{_lambda_.1} parent=1 // pred_fallthru
      _
    %v75 = vld [vmem:[%s0] sm:$0xf]
    %v76 = vld [vmem:[#allocation2] sm:$0xf]
    %v77 = vld [vmem:[#allocation2 + $0x4] sm:$0xf]
    %v78 = vld [vmem:[#allocation2 + $0x8] sm:$0xf]
    %v79 = vld [vmem:[#allocation2 + $0xc] sm:$0xf]
    %v80 = vld [vmem:[#allocation2 + $0x10] sm:$0xf]
    %v81 = vld [vmem:[#allocation2 + $0x14] sm:$0xf]
    %v82 = vld [vmem:[#allocation2 + $0x18] sm:$0xf]
    %v83 = vld [vmem:[#allocation2 + $0x1c] sm:$0xf]
    %v84 = vld [vmem:[#allocation2 + $0x20] sm:$0xf]
    %v85 = vld [vmem:[#allocation2 + $0x24] sm:$0xf]
    %v86 = vld [vmem:[#allocation2 + $0x28] sm:$0xf]
    %v87 = vld [vmem:[#allocation2 + $0x2c] sm:$0xf]
    %v88 = vld [vmem:[#allocation2 + $0x30] sm:$0xf]
    %v89 = vld [vmem:[#allocation2 + $0x34] sm:$0xf]
    %v90 = vld [vmem:[#allocation2 + $0x38] sm:$0xf]
    %v91 = vld [vmem:[#allocation2 + $0x3c] sm:$0xf]
    %v92 = vld [vmem:[%s2] sm:$0x1]
    %v94 = vlaneseq
    %v95 = vshrl.u32 %v94, 7
    %v96 = vsub.s32 0, %v95
    %v97 = vrot.slane %v92, %v96
    %v115 = vunpack.c.l.b16 %v76
    %v116 = vunpack.c.l.b16 %v77
    %v117 = vunpack.c.l.b16 %v78
    %v118 = vunpack.c.l.b16 %v79
    %v119 = vunpack.c.l.b16 %v80
    %v120 = vunpack.c.l.b16 %v81
    %v121 = vunpack.c.l.b16 %v82
    %v122 = vunpack.c.l.b16 %v83
    %v123 = vunpack.c.l.b16 %v84
    %v124 = vunpack.c.l.b16 %v85
    %v125 = vunpack.c.l.b16 %v86
    %v126 = vunpack.c.l.b16 %v87
    %v127 = vunpack.c.l.b16 %v88
    %v128 = vunpack.c.l.b16 %v89
    %v129 = vunpack.c.l.b16 %v90
    %v130 = vunpack.c.l.b16 %v91
    %v131 = vpack.c.b16 %v116, %v115
    %v132 = vpack.c.b16 %v118, %v117
    %v133 = vpack.c.b16 %v120, %v119
    %v134 = vpack.c.b16 %v122, %v121
    %v135 = vpack.c.b16 %v124, %v123
    %v136 = vpack.c.b16 %v126, %v125
    %v137 = vpack.c.b16 %v128, %v127
    %v138 = vpack.c.b16 %v130, %v129
    %147 = vmatprep.subr.bf16.mxu0 0
    %148 = vmatpush1.bf16.msra.mxu0 %v131
    %149 = vmatprep.subr.bf16.mxu0 0
    %150 = vmatpush1.bf16.msra.mxu0 %v132
    %151 = vmatprep.subr.bf16.mxu0 0
    %152 = vmatpush1.bf16.msra.mxu0 %v133
    %153 = vmatprep.subr.bf16.mxu0 0
    %154 = vmatpush1.bf16.msra.mxu0 %v134
    %155 = vmatprep.subr.bf16.mxu0 0
    %156 = vmatpush1.bf16.msra.mxu0 %v135
    %157 = vmatprep.subr.bf16.mxu0 0
    %158 = vmatpush1.bf16.msra.mxu0 %v136
    %159 = vmatprep.subr.bf16.mxu0 0
    %160 = vmatpush1.bf16.msra.mxu0 %v137
    %161 = vmatprep.subr.bf16.mxu0 0
    %162 = vmatpush1.bf16.msra.mxu0 %v138
    %163 = vmatprep.subr.bf16.mxu0 0
    %164 = vmatpush1.bf16.msra.mxu0 0
    %165 = vmatprep.subr.bf16.mxu0 0
    %166 = vmatpush1.bf16.msra.mxu0 0
    %167 = vmatprep.subr.bf16.mxu0 0
    %168 = vmatpush1.bf16.msra.mxu0 0
    %169 = vmatprep.subr.bf16.mxu0 0
    %170 = vmatpush1.bf16.msra.mxu0 0
    %171 = vmatprep.subr.bf16.mxu0 0
    %172 = vmatpush1.bf16.msra.mxu0 0
    %173 = vmatprep.subr.bf16.mxu0 0
    %174 = vmatpush1.bf16.msra.mxu0 0
    %175 = vmatprep.subr.bf16.mxu0 0
    %176 = vmatpush1.bf16.msra.mxu0 0
    %177 = vmatprep.subr.bf16.mxu0 0
    %178 = vmatpush1.bf16.msra.mxu0 0
    %179 = vmatprep.mubr.bf16.mxu0 0
    %180 = vmatmul.mubr.bf16.gmra.mrb[0].mxu0 %v75
    %v181 = vpop.f32.mrb[0].mxu0
    %v182 = vadd.f32 %v97, %v181
    %v183 = vpop.f32.mrb[0].mxu0
    %v184 = vpop.f32.mrb[0].mxu0
    %v185 = vpop.f32.mrb[0].mxu0
    %186 = vdwg.mxu0
    %v187 = vmax.f32 %v182, 0.0
    %v188 = vpack.c.bf16 %v187, %v187
    %v189 = vld [vmem:[#allocation5] sm:$0xf]
    %v190 = vld [vmem:[#allocation5 + $0x4] sm:$0xf]
    %v191 = vld [vmem:[#allocation5 + $0x8] sm:$0xf]
    %v192 = vld [vmem:[#allocation5 + $0xc] sm:$0xf]
    %v193 = vld [vmem:[#allocation5 + $0x10] sm:$0xf]
    %v194 = vld [vmem:[#allocation5 + $0x14] sm:$0xf]
    %v195 = vld [vmem:[#allocation5 + $0x18] sm:$0xf]
    %v196 = vld [vmem:[#allocation5 + $0x1c] sm:$0xf]
    %v197 = vld [vmem:[#allocation5 + $0x20] sm:$0xf]
    %v198 = vld [vmem:[#allocation5 + $0x24] sm:$0xf]
    %v199 = vld [vmem:[#allocation5 + $0x28] sm:$0xf]
    %v200 = vld [vmem:[#allocation5 + $0x2c] sm:$0xf]
    %v201 = vld [vmem:[#allocation5 + $0x30] sm:$0xf]
    %v202 = vld [vmem:[#allocation5 + $0x34] sm:$0xf]
    %v203 = vld [vmem:[#allocation5 + $0x38] sm:$0xf]
    %v204 = vld [vmem:[#allocation5 + $0x3c] sm:$0xf]
    %v205 = vld [vmem:[%s4] sm:$0x1]
    %v207 = vlaneseq
    %v208 = vshrl.u32 %v207, 7
    %v209 = vsub.s32 0, %v208
    %v210 = vrot.slane %v205, %v209
    %v228 = vunpack.c.l.b16 %v189
    %v229 = vunpack.c.l.b16 %v190
    %v230 = vunpack.c.l.b16 %v191
    %v231 = vunpack.c.l.b16 %v192
    %v232 = vunpack.c.l.b16 %v193
    %v233 = vunpack.c.l.b16 %v194
    %v234 = vunpack.c.l.b16 %v195
    %v235 = vunpack.c.l.b16 %v196
    %v236 = vunpack.c.l.b16 %v197
    %v237 = vunpack.c.l.b16 %v198
    %v238 = vunpack.c.l.b16 %v199
    %v239 = vunpack.c.l.b16 %v200
    %v240 = vunpack.c.l.b16 %v201
    %v241 = vunpack.c.l.b16 %v202
    %v242 = vunpack.c.l.b16 %v203
    %v243 = vunpack.c.l.b16 %v204
    %v244 = vpack.c.b16 %v229, %v228
    %v245 = vpack.c.b16 %v231, %v230
    %v246 = vpack.c.b16 %v233, %v232
    %v247 = vpack.c.b16 %v235, %v234
    %v248 = vpack.c.b16 %v237, %v236
    %v249 = vpack.c.b16 %v239, %v238
    %v250 = vpack.c.b16 %v241, %v240
    %v251 = vpack.c.b16 %v243, %v242
    %260 = vmatprep.subr.bf16.mxu0 0
    %261 = vmatpush1.bf16.msra.mxu0 %v244
    %262 = vmatprep.subr.bf16.mxu0 0
    %263 = vmatpush1.bf16.msra.mxu0 %v245
    %264 = vmatprep.subr.bf16.mxu0 0
    %265 = vmatpush1.bf16.msra.mxu0 %v246
    %266 = vmatprep.subr.bf16.mxu0 0
    %267 = vmatpush1.bf16.msra.mxu0 %v247
    %268 = vmatprep.subr.bf16.mxu0 0
    %269 = vmatpush1.bf16.msra.mxu0 %v248
    %270 = vmatprep.subr.bf16.mxu0 0
    %271 = vmatpush1.bf16.msra.mxu0 %v249
    %272 = vmatprep.subr.bf16.mxu0 0
    %273 = vmatpush1.bf16.msra.mxu0 %v250
    %274 = vmatprep.subr.bf16.mxu0 0
    %275 = vmatpush1.bf16.msra.mxu0 %v251
    %276 = vmatprep.subr.bf16.mxu0 0
    %277 = vmatpush1.bf16.msra.mxu0 0
    %278 = vmatprep.subr.bf16.mxu0 0
    %279 = vmatpush1.bf16.msra.mxu0 0
    %280 = vmatprep.subr.bf16.mxu0 0
    %281 = vmatpush1.bf16.msra.mxu0 0
    %282 = vmatprep.subr.bf16.mxu0 0
    %283 = vmatpush1.bf16.msra.mxu0 0
    %284 = vmatprep.subr.bf16.mxu0 0
    %285 = vmatpush1.bf16.msra.mxu0 0
    %286 = vmatprep.subr.bf16.mxu0 0
    %287 = vmatpush1.bf16.msra.mxu0 0
    %288 = vmatprep.subr.bf16.mxu0 0
    %289 = vmatpush1.bf16.msra.mxu0 0
    %290 = vmatprep.subr.bf16.mxu0 0
    %291 = vmatpush1.bf16.msra.mxu0 0
    %292 = vmatprep.mubr.bf16.mxu0 0
    %293 = vmatmul.mubr.bf16.gmra.mrb[0].mxu0 %v188
    %v294 = vpop.f32.mrb[0].mxu0
    %v295 = vadd.f32 %v210, %v294
    %v296 = vpop.f32.mrb[0].mxu0
    %v297 = vpop.f32.mrb[0].mxu0
    %v298 = vpop.f32.mrb[0].mxu0
    %299 = vdwg.mxu0
    %v300 = vmax.f32 %v295, 0.0
    %v301 = vpack.c.bf16 %v300, %v300
    %v302 = vld [vmem:[#allocation7] sm:$0xf]
    %v303 = vld [vmem:[#allocation7 + $0x4] sm:$0xf]
    %v304 = vld [vmem:[#allocation7 + $0x8] sm:$0xf]
    %v305 = vld [vmem:[#allocation7 + $0xc] sm:$0xf]
    %v306 = vld [vmem:[#allocation7 + $0x10] sm:$0xf]
    %v307 = vld [vmem:[#allocation7 + $0x14] sm:$0xf]
    %v308 = vld [vmem:[#allocation7 + $0x18] sm:$0xf]
    %v309 = vld [vmem:[#allocation7 + $0x1c] sm:$0xf]
    %v310 = vld [vmem:[#allocation7 + $0x20] sm:$0xf]
    %v311 = vld [vmem:[#allocation7 + $0x24] sm:$0xf]
    %v312 = vld [vmem:[#allocation7 + $0x28] sm:$0xf]
    %v313 = vld [vmem:[#allocation7 + $0x2c] sm:$0xf]
    %v314 = vld [vmem:[#allocation7 + $0x30] sm:$0xf]
    %v315 = vld [vmem:[#allocation7 + $0x34] sm:$0xf]
    %v316 = vld [vmem:[#allocation7 + $0x38] sm:$0xf]
    %v317 = vld [vmem:[#allocation7 + $0x3c] sm:$0xf]
    %v318 = vld [vmem:[%s6] sm:$0x1]
    %v320 = vlaneseq
    %v321 = vshrl.u32 %v320, 7
    %v322 = vsub.s32 0, %v321
    %v323 = vrot.slane %v318, %v322
    %v341 = vunpack.c.l.b16 %v302
    %v342 = vunpack.c.l.b16 %v303
    %v343 = vunpack.c.l.b16 %v304
    %v344 = vunpack.c.l.b16 %v305
    %v345 = vunpack.c.l.b16 %v306
    %v346 = vunpack.c.l.b16 %v307
    %v347 = vunpack.c.l.b16 %v308
    %v348 = vunpack.c.l.b16 %v309
    %v349 = vunpack.c.l.b16 %v310
    %v350 = vunpack.c.l.b16 %v311
    %v351 = vunpack.c.l.b16 %v312
    %v352 = vunpack.c.l.b16 %v313
    %v353 = vunpack.c.l.b16 %v314
    %v354 = vunpack.c.l.b16 %v315
    %v355 = vunpack.c.l.b16 %v316
    %v356 = vunpack.c.l.b16 %v317
    %v357 = vpack.c.b16 %v342, %v341
    %v358 = vpack.c.b16 %v344, %v343
    %v359 = vpack.c.b16 %v346, %v345
    %v360 = vpack.c.b16 %v348, %v347
    %v361 = vpack.c.b16 %v350, %v349
    %v362 = vpack.c.b16 %v352, %v351
    %v363 = vpack.c.b16 %v354, %v353
    %v364 = vpack.c.b16 %v356, %v355
    %373 = vmatprep.subr.bf16.mxu0 0
    %374 = vmatpush1.bf16.msra.mxu0 %v357
    %375 = vmatprep.subr.bf16.mxu0 0
    %376 = vmatpush1.bf16.msra.mxu0 %v358
    %377 = vmatprep.subr.bf16.mxu0 0
    %378 = vmatpush1.bf16.msra.mxu0 %v359
    %379 = vmatprep.subr.bf16.mxu0 0
    %380 = vmatpush1.bf16.msra.mxu0 %v360
    %381 = vmatprep.subr.bf16.mxu0 0
    %382 = vmatpush1.bf16.msra.mxu0 %v361
    %383 = vmatprep.subr.bf16.mxu0 0
    %384 = vmatpush1.bf16.msra.mxu0 %v362
    %385 = vmatprep.subr.bf16.mxu0 0
    %386 = vmatpush1.bf16.msra.mxu0 %v363
    %387 = vmatprep.subr.bf16.mxu0 0
    %388 = vmatpush1.bf16.msra.mxu0 %v364
    %389 = vmatprep.subr.bf16.mxu0 0
    %390 = vmatpush1.bf16.msra.mxu0 0
    %391 = vmatprep.subr.bf16.mxu0 0
    %392 = vmatpush1.bf16.msra.mxu0 0
    %393 = vmatprep.subr.bf16.mxu0 0
    %394 = vmatpush1.bf16.msra.mxu0 0
    %395 = vmatprep.subr.bf16.mxu0 0
    %396 = vmatpush1.bf16.msra.mxu0 0
    %397 = vmatprep.subr.bf16.mxu0 0
    %398 = vmatpush1.bf16.msra.mxu0 0
    %399 = vmatprep.subr.bf16.mxu0 0
    %400 = vmatpush1.bf16.msra.mxu0 0
    %401 = vmatprep.subr.bf16.mxu0 0
    %402 = vmatpush1.bf16.msra.mxu0 0
    %403 = vmatprep.subr.bf16.mxu0 0
    %404 = vmatpush1.bf16.msra.mxu0 0
    %405 = vmatprep.mubr.bf16.mxu0 0
    %406 = vmatmul.mubr.bf16.gmra.mrb[0].mxu0 %v301
    %v407 = vpop.f32.mrb[0].mxu0
    %v408 = vadd.f32 %v323, %v407
    %v409 = vpop.f32.mrb[0].mxu0
    %v410 = vpop.f32.mrb[0].mxu0
    %v411 = vpop.f32.mrb[0].mxu0
    %412 = vdwg.mxu0
    %v413 = vmax.f32 %v408, 0.0
    %v414 = vpack.c.bf16 %v413, %v413
    %v415 = vld [vmem:[%s7] sm:$0xf]
    %v416 = vld [vmem:[%s7 + $0x4] sm:$0xf]
    %v417 = vld [vmem:[%s7 + $0x8] sm:$0xf]
    %v418 = vld [vmem:[%s7 + $0xc] sm:$0xf]
    %v419 = vld [vmem:[%s7 + $0x10] sm:$0xf]
    %v420 = vld [vmem:[%s7 + $0x14] sm:$0xf]
    %v421 = vld [vmem:[%s7 + $0x18] sm:$0xf]
    %v422 = vld [vmem:[%s7 + $0x1c] sm:$0xf]
    %v423 = vld [vmem:[%s7 + $0x20] sm:$0xf]
    %v424 = vld [vmem:[%s7 + $0x24] sm:$0xf]
    %v425 = vld [vmem:[%s7 + $0x28] sm:$0xf]
    %v426 = vld [vmem:[%s7 + $0x2c] sm:$0xf]
    %v427 = vld [vmem:[%s7 + $0x30] sm:$0xf]
    %v428 = vld [vmem:[%s7 + $0x34] sm:$0xf]
    %v429 = vld [vmem:[%s7 + $0x38] sm:$0xf]
    %v430 = vld [vmem:[%s7 + $0x3c] sm:$0xf]
    %v431 = vld [vmem:[%s8] sm:$0x1]
    %v433 = vlaneseq
    %v434 = vshrl.u32 %v433, 7
    %v435 = vsub.s32 0, %v434
    %v436 = vrot.slane %v431, %v435
    %v454 = vunpack.c.l.b16 %v415
    %v455 = vunpack.c.l.b16 %v416
    %v456 = vunpack.c.l.b16 %v417
    %v457 = vunpack.c.l.b16 %v418
    %v458 = vunpack.c.l.b16 %v419
    %v459 = vunpack.c.l.b16 %v420
    %v460 = vunpack.c.l.b16 %v421
    %v461 = vunpack.c.l.b16 %v422
    %v462 = vunpack.c.l.b16 %v423
    %v463 = vunpack.c.l.b16 %v424
    %v464 = vunpack.c.l.b16 %v425
    %v465 = vunpack.c.l.b16 %v426
    %v466 = vunpack.c.l.b16 %v427
    %v467 = vunpack.c.l.b16 %v428
    %v468 = vunpack.c.l.b16 %v429
    %v469 = vunpack.c.l.b16 %v430
    %v470 = vpack.c.b16 %v455, %v454
    %v471 = vpack.c.b16 %v457, %v456
    %v472 = vpack.c.b16 %v459, %v458
    %v473 = vpack.c.b16 %v461, %v460
    %v474 = vpack.c.b16 %v463, %v462
    %v475 = vpack.c.b16 %v465, %v464
    %v476 = vpack.c.b16 %v467, %v466
    %v477 = vpack.c.b16 %v469, %v468
    %486 = vmatprep.subr.bf16.mxu0 0
    %487 = vmatpush1.bf16.msra.mxu0 %v470
    %488 = vmatprep.subr.bf16.mxu0 0
    %489 = vmatpush1.bf16.msra.mxu0 %v471
    %490 = vmatprep.subr.bf16.mxu0 0
    %491 = vmatpush1.bf16.msra.mxu0 %v472
    %492 = vmatprep.subr.bf16.mxu0 0
    %493 = vmatpush1.bf16.msra.mxu0 %v473
    %494 = vmatprep.subr.bf16.mxu0 0
    %495 = vmatpush1.bf16.msra.mxu0 %v474
    %496 = vmatprep.subr.bf16.mxu0 0
    %497 = vmatpush1.bf16.msra.mxu0 %v475
    %498 = vmatprep.subr.bf16.mxu0 0
    %499 = vmatpush1.bf16.msra.mxu0 %v476
    %500 = vmatprep.subr.bf16.mxu0 0
    %501 = vmatpush1.bf16.msra.mxu0 %v477
    %502 = vmatprep.subr.bf16.mxu0 0
    %503 = vmatpush1.bf16.msra.mxu0 0
    %504 = vmatprep.subr.bf16.mxu0 0
    %505 = vmatpush1.bf16.msra.mxu0 0
    %506 = vmatprep.subr.bf16.mxu0 0
    %507 = vmatpush1.bf16.msra.mxu0 0
    %508 = vmatprep.subr.bf16.mxu0 0
    %509 = vmatpush1.bf16.msra.mxu0 0
    %510 = vmatprep.subr.bf16.mxu0 0
    %511 = vmatpush1.bf16.msra.mxu0 0
    %512 = vmatprep.subr.bf16.mxu0 0
    %513 = vmatpush1.bf16.msra.mxu0 0
    %514 = vmatprep.subr.bf16.mxu0 0
    %515 = vmatpush1.bf16.msra.mxu0 0
    %516 = vmatprep.subr.bf16.mxu0 0
    %517 = vmatpush1.bf16.msra.mxu0 0
    %518 = vmatprep.mubr.bf16.mxu0 0
    %519 = vmatmul.mubr.bf16.gmra.mrb[0].mxu0 %v414
    %v520 = vpop.f32.mrb[0].mxu0
    %v521 = vadd.f32 %v436, %v520
    %v522 = vpop.f32.mrb[0].mxu0
    %v523 = vpop.f32.mrb[0].mxu0
    %v524 = vpop.f32.mrb[0].mxu0
    %525 = vdwg.mxu0
    %526 = vst [vmem:[#allocation8] sm:$0xff] %v521
    // Predicated region
    $region50: #{_lambda_.1} parent=1 // pred_check
      _
    $region51: #{_lambda_.1} parent=1 // pred_check_branch
      %528 = sbr.rel (0) target = $region53
    $region52: #{_lambda_.1} parent=1 // pred_region
      %s530 = ssub.s32 128, 128
      %531 = vsyncadd [#allocation4], %s530
      %s533 = sshll.u32 [#allocation8], 4
      %s534 = int_to_ptr.vmem [resolvable:$true] %s533
      %536 = dma.vmem_to_hbm [thread:$0]  %s534, 128, %s9, [#allocation4]
    $region53: #{_lambda_.1} parent=1 // pred_fallthru
      _
    // Predicated region
    $region54: #{_lambda_.1} parent=1 // pred_check
      _
    $region55: #{_lambda_.1} parent=1 // pred_check_branch
      %538 = sbr.rel (0) target = $region57
    $region56: #{_lambda_.1} parent=1 // pred_region
      %539 = dma.done [#allocation4], 128
    $region57: #{_lambda_.1} parent=1 // pred_fallthru
      _
    %540 = vsyncpa [#allocation3], 1
    %541 = vsyncpa [#allocation6], 1
    %542 = vsyncpa [#allocation4], 1

</llo_original>
